<compile_context>
chip_gen: v7x
topology: tpu7x:2x2x1
jax: 0.10.0
libtpu: 0.0.40
codegen_flags: <defaults>
</compile_context>

<pallas_src>
import functools

import jax
import jax.numpy as jnp
from jax import lax
from jax.experimental import pallas as pl
from jax.experimental.pallas import tpu as pltpu


# ---------------------------------------------------------------------------
# Kernel
# ---------------------------------------------------------------------------
def _discriminant_kernel(x_ref, lab_ref, w_ref, b_ref, o_ref, *, approx):
    """One row-chunk per grid step.

    x_ref   : VMEM (TR, D)  flattened input rows (compute dtype, e.g. bf16)
    lab_ref : VMEM (TR, 1)  int32 per-row gather index
    w_ref   : VMEM (D, D)   fc weight, pre-transposed to (in, out), resident
    b_ref   : VMEM (1, D)   fc bias (f32), resident
    o_ref   : VMEM (TR, 1)  selected probability per row (original dtype)
    """
    x = x_ref[...]                                        # (TR, D)

    # nn.Linear: logits = x @ W^T + b.  W is already transposed in the wrapper,
    # so this is a plain (TR,K)x(K,N) MXU matmul with f32 accumulation.
    logits = jnp.dot(x, w_ref[...], preferred_element_type=jnp.float32)
    logits = logits + b_ref[...]                          # (TR, D) + (1, D), f32

    # Numerically-stable softmax; only the label column of the numerator is
    # needed, so select it with a compare+masked reduce before normalising.
    m = jnp.max(logits, axis=-1, keepdims=True)           # (TR, 1)
    e = jnp.exp(logits - m)                               # (TR, D)
    denom = jnp.sum(e, axis=-1, keepdims=True)            # (TR, 1)

    col = lax.broadcasted_iota(jnp.int32, (1, e.shape[-1]), 1)   # (1, D)
    sel_mask = col == lab_ref[...]                         # broadcast -> (TR, D)
    num = jnp.sum(jnp.where(sel_mask, e, 0.0),
                  axis=-1, keepdims=True)                  # (TR, 1)

    sel = num * pl.reciprocal(denom, approx=approx)
    o_ref[...] = sel.astype(o_ref.dtype)


# ---------------------------------------------------------------------------
# Wrapper helpers
# ---------------------------------------------------------------------------
def _round_up(v, m):
    return ((v + m - 1) // m) * m


def _tpu_generation():
    try:
        kind = jax.devices()[0].device_kind.lower()
    except Exception:
        return None
    for g in ("v7", "v6", "v5", "v4"):
        if g in kind:
            return g
    return None


def _resident_spec(block_shape, single_buffer):
    """BlockSpec for a grid-invariant (resident) input."""
    index_map = lambda i: (0,) * len(block_shape)
    if single_buffer:
        try:
            # Block index never changes -> one buffer is enough; saves VMEM
            # (matters on v7x's 64 MiB with large D).
            return pl.BlockSpec(block_shape, index_map,
                                pipeline_mode=pl.Buffered(1))
        except (TypeError, AttributeError):
            pass
    return pl.BlockSpec(block_shape, index_map)


# ---------------------------------------------------------------------------
# Public entry point
# ---------------------------------------------------------------------------
@functools.partial(
    jax.jit,
    static_argnames=("block_rows", "compute_dtype", "approx_reciprocal"))
def discriminant(x, labels, fc_w, fc_b, *,
                 block_rows=None,
                 compute_dtype=jnp.bfloat16,
                 approx_reciprocal=True):
    """probs = softmax(x @ fc_w.T + fc_b); return probs[b, s, labels[b]]."""
    B, S, D = x.shape
    R = B * S
    gen = _tpu_generation()

    # ---- row-tile selection (generation aware) ------------------------------
    if block_rows is None:
        # v5e/v6e: 128 MiB VMEM and the kernel is most HBM-bound -> bigger tile.
        block_rows = 1024 if gen in ("v5", "v6") else 512
    block_rows = max(16, (block_rows // 16) * 16)

    if R <= 16:
        TR = R                                     # tiny: one full-extent block
    else:
        TR = min(block_rows, _round_up(R, 16))
        # v7x has 2 TensorCores: make sure a "parallel" grid has >= 2 blocks.
        if gen == "v7" and pl.cdiv(R, TR) < 2 and R >= 32:
            TR = _round_up(pl.cdiv(R, 2), 16)
    num_blocks = pl.cdiv(R, TR)

    # ---- operand preparation (no padding copies) ----------------------------
    x2 = x.reshape(R, D).astype(compute_dtype)     # view + (fused) dtype cast
    wt = fc_w.astype(compute_dtype).T              # one-time (in, out) transpose
    b2 = fc_b.astype(jnp.float32).reshape(1, D)    # bias stays f32

    lab = labels.astype(jnp.int32).reshape(-1)     # handles (B,) or (B, 1)
    row_lab = jnp.repeat(lab, S).reshape(R, 1)     # per-row gather index (tiny)

    # ---- VMEM budgeting ------------------------------------------------------
    c_bytes = jnp.dtype(compute_dtype).itemsize
    o_bytes = jnp.dtype(x.dtype).itemsize
    single_buffer_w = D >= 1024                    # only worth it for big D
    w_bufs = 1 if single_buffer_w else 2
    vmem_est = (2 * TR * D * c_bytes               # x, double-buffered
                + 2 * TR * 4                       # labels
                + w_bufs * D * D * c_bytes         # resident weight
                + w_bufs * D * 4                   # resident bias
                + 2 * TR * o_bytes                 # output
                + 3 * TR * D * 4)                  # f32 logits/exp intermediates

    cp_kwargs = {"dimension_semantics": ("parallel",)}   # megacore sharding
    if vmem_est > (12 << 20):
        cp_kwargs["vmem_limit_bytes"] = min(int(1.5 * vmem_est) + (8 << 20),
                                            112 << 20)

    out = pl.pallas_call(
        functools.partial(_discriminant_kernel, approx=approx_reciprocal),
        out_shape=jax.ShapeDtypeStruct((R, 1), x.dtype),
        grid=(num_blocks,),
        in_specs=[
            pl.BlockSpec((TR, D), lambda i: (i, 0)),        # x rows (streamed)
            pl.BlockSpec((TR, 1), lambda i: (i, 0)),        # per-row labels
            _resident_spec((D, D), single_buffer_w),        # fc weight (resident)
            _resident_spec((1, D), single_buffer_w),        # fc bias   (resident)
        ],
        out_specs=pl.BlockSpec((TR, 1), lambda i: (i, 0)),
        compiler_params=pltpu.CompilerParams(**cp_kwargs),
    )(x2, row_lab, wt, b2)

    return out[:, 0].reshape(B, S)


# ---------------------------------------------------------------------------
# Pure-JAX reference (mirrors the PyTorch forward, f32 throughout)
# ---------------------------------------------------------------------------
def _reference(x, labels, fc_w, fc_b):
    B, S, D = x.shape
    logits = jnp.einsum('bsd,ed->bse', x, fc_w) + fc_b
    probs = jax.nn.softmax(logits, axis=-1)
    lab = labels.astype(jnp.int32).reshape(B)
    idx = jnp.broadcast_to(lab[:, None, None], (B, S, 1))
    return jnp.take_along_axis(probs, idx, axis=-1)[..., 0]


if __name__ == "__main__":
    key = jax.random.PRNGKey(0)

    # --- small test, exact f32 path (single block, full-extent tiles) --------
    B, S, D = 2, 8, 32
    k_x, k_w, k_b, k_lab, key = jax.random.split(key, 5)
    x = jax.random.normal(k_x, (B, S, D), dtype=jnp.float32)
    fc_w = jax.random.normal(k_w, (D, D), dtype=jnp.float32) * 0.1
    fc_b = jax.random.normal(k_b, (D,), dtype=jnp.float32) * 0.1
    labels = jax.random.randint(k_lab, (B,), 0, D, dtype=jnp.int32)

    out = jax.block_until_ready(
        discriminant(x, labels, fc_w, fc_b,
                     compute_dtype=jnp.float32, approx_reciprocal=False))
    ref = _reference(x, labels, fc_w, fc_b)
    assert out.shape == (B, S)
    assert jnp.allclose(out, ref, rtol=1e-5, atol=1e-5), "mismatch (f32 path)"

    # --- small test, default bf16 production path -----------------------------
    out_bf = jax.block_until_ready(discriminant(x, labels, fc_w, fc_b))
    assert jnp.allclose(out_bf, ref, rtol=5e-2, atol=1e-2), "mismatch (bf16 small)"

    # --- larger test: multi-block grid, non-divisible row count (R=640),
    #     (B, 1) labels, bf16 + approx reciprocal ------------------------------
    B2, S2, D2 = 4, 160, 128
    k_x, k_w, k_b, k_lab, key = jax.random.split(key, 5)
    x2 = jax.random.normal(k_x, (B2, S2, D2), dtype=jnp.float32)
    fc_w2 = jax.random.normal(k_w, (D2, D2), dtype=jnp.float32) * 0.05
    fc_b2 = jax.random.normal(k_b, (D2,), dtype=jnp.float32) * 0.05
    labels2 = jax.random.randint(k_lab, (B2, 1), 0, D2, dtype=jnp.int32)

    out2 = jax.block_until_ready(discriminant(x2, labels2, fc_w2, fc_b2))
    ref2 = _reference(x2, labels2, fc_w2, fc_b2)
    assert out2.shape == (B2, S2)
    assert jnp.allclose(out2, ref2, rtol=5e-2, atol=1e-2), "mismatch (bf16 large)"

    print("KERNEL_OK")
</pallas_src>

<mosaic_0001>
module attributes {stable_mosaic.version = 11 : i64} {
  func.func @_discriminant_kernel(%arg0: i32, %arg1: memref<16x32xf32, #tpu.memory_space<vmem>>, %arg2: memref<16x1xi32, #tpu.memory_space<vmem>>, %arg3: memref<32x32xf32, #tpu.memory_space<vmem>>, %arg4: memref<1x32xf32, #tpu.memory_space<vmem>>, %arg5: memref<16x1xf32, #tpu.memory_space<vmem>>) attributes {dimension_semantics = [#tpu.dimension_semantics<parallel>], iteration_bounds = array<i64: 1>, scalar_prefetch = 0 : i64, scratch_operands = 0 : i64, tpu.core_type = #tpu.core_type<tc>, window_params = [{transform_indices = @transform_0, window_bounds = array<i64: 16, 32>}, {transform_indices = @transform_1, window_bounds = array<i64: 16, 1>}, {pipeline_mode = #tpu.pipeline_mode<synchronous>, transform_indices = @transform_2, window_bounds = array<i64: 32, 32>}, {pipeline_mode = #tpu.pipeline_mode<synchronous>, transform_indices = @transform_3, window_bounds = array<i64: 1, 32>}, {transform_indices = @transform_4, window_bounds = array<i64: 16, 1>}]} {
    %c0 = arith.constant 0 : index
    %c0_0 = arith.constant 0 : index
    %0 = vector.load %arg1[%c0, %c0_0] : memref<16x32xf32, #tpu.memory_space<vmem>>, vector<16x32xf32>
    %c0_1 = arith.constant 0 : index
    %c0_2 = arith.constant 0 : index
    %1 = vector.load %arg3[%c0_1, %c0_2] : memref<32x32xf32, #tpu.memory_space<vmem>>, vector<32x32xf32>
    %cst = arith.constant dense<0.000000e+00> : vector<16x32xf32>
    %2 = tpu.matmul %0, %1, %cst {dimension_numbers = #tpu.dot_dimension_numbers<[1], [0], [0], [1], [0, 0, 1, 1], [], []>} : vector<16x32xf32>, vector<32x32xf32>, vector<16x32xf32> -> vector<16x32xf32>
    %c0_3 = arith.constant 0 : index
    %c0_4 = arith.constant 0 : index
    %3 = vector.load %arg4[%c0_3, %c0_4] : memref<1x32xf32, #tpu.memory_space<vmem>>, vector<1x32xf32>
    %4 = vector.broadcast %3 : vector<1x32xf32> to vector<16x32xf32>
    %5 = arith.addf %2, %4 : vector<16x32xf32>
    %cst_5 = arith.constant dense<0xFF800000> : vector<16xf32>
    %6 = vector.multi_reduction <maximumf>, %5, %cst_5 [1] : vector<16x32xf32> to vector<16xf32>
    %7 = vector.shape_cast %6 : vector<16xf32> to vector<16x1xf32>
    %8 = vector.broadcast %7 : vector<16x1xf32> to vector<16x32xf32>
    %9 = arith.subf %5, %8 : vector<16x32xf32>
    %10 = math.exp %9 : vector<16x32xf32>
    %cst_6 = arith.constant dense<0.000000e+00> : vector<16xf32>
    %11 = vector.multi_reduction <add>, %10, %cst_6 [1] : vector<16x32xf32> to vector<16xf32>
    %12 = vector.shape_cast %11 : vector<16xf32> to vector<16x1xf32>
    %13 = tpu.iota {dimensions = array<i32: 1>} : vector<1x32xi32>
    %c0_7 = arith.constant 0 : index
    %c0_8 = arith.constant 0 : index
    %14 = vector.load %arg2[%c0_7, %c0_8] : memref<16x1xi32, #tpu.memory_space<vmem>>, vector<16x1xi32>
    %15 = vector.broadcast %13 : vector<1x32xi32> to vector<16x32xi32>
    %16 = vector.broadcast %14 : vector<16x1xi32> to vector<16x32xi32>
    %17 = arith.cmpi eq, %15, %16 : vector<16x32xi32>
    %cst_9 = arith.constant 0.000000e+00 : f32
    %18 = vector.broadcast %cst_9 : f32 to vector<16x32xf32>
    %19 = arith.select %17, %10, %18 : vector<16x32xi1>, vector<16x32xf32>
    %cst_10 = arith.constant dense<0.000000e+00> : vector<16xf32>
    %20 = vector.multi_reduction <add>, %19, %cst_10 [1] : vector<16x32xf32> to vector<16xf32>
    %21 = vector.shape_cast %20 : vector<16xf32> to vector<16x1xf32>
    %22 = tpu.reciprocal %12 : vector<16x1xf32> -> vector<16x1xf32>
    %23 = arith.mulf %21, %22 : vector<16x1xf32>
    %c0_11 = arith.constant 0 : index
    %c0_12 = arith.constant 0 : index
    %24 = vector.load %arg5[%c0_11, %c0_12] : memref<16x1xf32, #tpu.memory_space<vmem>>, vector<16x1xf32>
    tpu.vector_store %arg5[%c0_11, %c0_12], %23 {strides = array<i32>} : memref<16x1xf32, #tpu.memory_space<vmem>>, vector<16x1xf32>,
    return
  }
  func.func @transform_0(%arg0: i32) -> (i32, i32) {
    %c0_i32 = arith.constant 0 : i32
    %c0_i32_0 = arith.constant 0 : i32
    return %arg0, %c0_i32 : i32, i32
  }
  func.func @transform_1(%arg0: i32) -> (i32, i32) {
    %c0_i32 = arith.constant 0 : i32
    %c0_i32_0 = arith.constant 0 : i32
    return %arg0, %c0_i32 : i32, i32
  }
  func.func @transform_2(%arg0: i32) -> (i32, i32) {
    %c0_i32 = arith.constant 0 : i32
    %c0_i32_0 = arith.constant 0 : i32
    %c0_i32_1 = arith.constant 0 : i32
    return %c0_i32, %c0_i32_0 : i32, i32
  }
  func.func @transform_3(%arg0: i32) -> (i32, i32) {
    %c0_i32 = arith.constant 0 : i32
    %c0_i32_0 = arith.constant 0 : i32
    %c0_i32_1 = arith.constant 0 : i32
    return %c0_i32, %c0_i32_0 : i32, i32
  }
  func.func @transform_4(%arg0: i32) -> (i32, i32) {
    %c0_i32 = arith.constant 0 : i32
    %c0_i32_0 = arith.constant 0 : i32
    return %arg0, %c0_i32 : i32, i32
  }
}

</mosaic_0001>

<llo_original>
// kernel: squeeze.1
$region0: #{squeeze.1}
  %s0 = inlined_call_operand.vmem [shape: f32[16], index: 0, kind: input, shape index: {}]
  %s1 = inlined_call_operand.hbm [shape: f32[2,8], index: 1, kind: output, shape index: {}]
  $region1: #{squeeze.1} parent=0
    #allocation0 [shape = 'u8[1024]{0}', space=vmem, size = 0x400, scoped, tag = 'operand span for operand 1']
    #allocation1 [shape = 's32[1]{0}', space=sflag, size = 0x4, scoped, tag = 'scoped memory for squeeze.1']
    #allocation2 [shape = 'u8[4096]{0}', space=vmem, size = 0x1000, scoped, tag = 'scoped mem for output reshape']
    #allocation3 [shape = 'u8[4096]{0}', space=vmem, size = 0x1000, scoped, tag = 'scoped mem for input reshape']
    %2 = vsyncpa [#allocation1], 0
    %s4 = sshllo.u32 0, 1
    %v5 = vld [vmem:[%s0] sm:%s4]
    %6 = vst [vmem:[#allocation3] sm:%s4] %v5
    %v7 = vld [vmem:[#allocation3] sm:$0x1]
    %vm8 = vcmask 64512
    %9 = vst.msk [vmem:[#allocation2] sm:$0x1] %vm8, %v7
    %v10 = vld [vmem:[#allocation3] sm:$0x1]
    %11 = vrot.lane.b32.xlu0 %v10, 120
    %v12 = vpop.permute.xlu0 %11
    %vm13 = vcmask 64512
    %s14 = scalar_lea.vmem [#allocation2], 1
    %15 = vst.msk [vmem:[%s14] sm:$0x1] %vm13, %v12
    %s17 = sshllo.u32 0, 2
    %v19 = vld [vmem:[#allocation2] sm:%s17]
    %s20 = sshllo.u32 0, 2
    %21 = vst [vmem:[#allocation0] sm:%s20] %v19
    %s23 = ssub.s32 32, 32
    %24 = vsyncadd [#allocation1], %s23
    %s26 = sshll.u32 [#allocation0], 4
    %s27 = int_to_ptr.vmem [resolvable:$true] %s26
    %29 = dma.vmem_to_hbm [thread:$0]  %s27, 32, %s1, [#allocation1]
    %30 = dma.done [#allocation1], 32
    %31 = vsyncpa [#allocation1], 1

// kernel: discriminant.1
$region0: #{discriminant.1}
  #allocation0 [shape = 'u32[]', space=smem, size = 0x4, offset = 0x4, fixed_abs, tag = 'smem constant byte address 0x4 - core index']
  #allocation1 [shape = 'u32[144,128]{1,0:T(1,128)}', space=vmem, size = 0x12000, scoped, tag = 'internal scratch']
  %s0 = inlined_call_operand.vmem [shape: f32[16,32], index: 0, kind: input, shape index: {}]
  %s1 = inlined_call_operand.vmem [shape: s32[16,1], index: 1, kind: input, shape index: {}]
  %s2 = inlined_call_operand.vmem [shape: f32[32,32], index: 2, kind: input, shape index: {}]
  %s3 = inlined_call_operand.vmem [shape: f32[1,32], index: 3, kind: input, shape index: {}]
  %s4 = inlined_call_operand.vmem [shape: f32[16,1], index: 4, kind: output, shape index: {}]
  %s5 = sld [smem:[#allocation0]]
  $region26: #{discriminant.1} parent=0
    _
  %s7 = ssub.s32 1, %s5
  %s8 = scalar_select 0, %s7, %s5
  // Predicated region
  $region2: #{discriminant.1} parent=0 // pred_check
    _
  $region3: #{discriminant.1} parent=0 // pred_check_branch
    %10 = sbr.rel (0) target = $region5
  $region4: #{discriminant.1} parent=0 // pred_region
    _
  $region5: #{discriminant.1} parent=0 // pred_fallthru
    _
  // Predicated region
  $region6: #{discriminant.1} parent=0 // pred_check
    _
  $region7: #{discriminant.1} parent=0 // pred_check_branch
    %12 = sbr.rel (0) target = $region9
  $region8: #{discriminant.1} parent=0 // pred_region
    _
  $region9: #{discriminant.1} parent=0 // pred_fallthru
    _
  // Predicated region
  $region10: #{discriminant.1} parent=0 // pred_check
    _
  $region11: #{discriminant.1} parent=0 // pred_check_branch
    %14 = sbr.rel (0) target = $region13
  $region12: #{discriminant.1} parent=0 // pred_region
    _
  $region13: #{discriminant.1} parent=0 // pred_fallthru
    _
  // Predicated region
  $region14: #{discriminant.1} parent=0 // pred_check
    _
  $region15: #{discriminant.1} parent=0 // pred_check_branch
    %16 = sbr.rel (0) target = $region17
  $region16: #{discriminant.1} parent=0 // pred_region
    _
  $region17: #{discriminant.1} parent=0 // pred_fallthru
    _
  %v17 = vld [vmem:[%s0] sm:$0xff]
  %v18 = vld [vmem:[%s0 + $0x8] sm:$0xff]
  %v19 = vld [vmem:[%s2] sm:$0xff]
  %v20 = vld [vmem:[%s2 + $0x8] sm:$0xff]
  %v21 = vld [vmem:[%s2 + $0x10] sm:$0xff]
  %v22 = vld [vmem:[%s2 + $0x18] sm:$0xff]
  %v23 = vld [vmem:[%s3] sm:$0x1]
  %v25 = vlaneseq
  %v26 = vshrl.u32 %v25, 7
  %v27 = vsub.s32 0, %v26
  %v28 = vrot.slane %v23, %v27
  %vm30 = vcmask 261120
  %v32 = vsel %vm30, %v17, 0
  %v35 = vsel %vm30, %v18, 0
  %37 = vmatprep.subr.mxu0 0.0
  %38 = vmatpush1.msra.mxu0 %v19
  %39 = vmatprep.subr.mxu0 0.0
  %40 = vmatpush1.msra.mxu0 %v20
  %41 = vmatprep.subr.mxu0 0.0
  %42 = vmatpush1.msra.mxu0 %v21
  %43 = vmatprep.subr.mxu0 0.0
  %44 = vmatpush1.msra.mxu0 %v22
  %45 = vmatprep.subr.mxu0 0.0
  %46 = vmatpush1.msra.mxu0 0.0
  %47 = vmatprep.subr.mxu0 0.0
  %48 = vmatpush1.msra.mxu0 0.0
  %49 = vmatprep.subr.mxu0 0.0
  %50 = vmatpush1.msra.mxu0 0.0
  %51 = vmatprep.subr.mxu0 0.0
  %52 = vmatpush1.msra.mxu0 0.0
  %53 = vmatprep.subr.mxu0 0.0
  %54 = vmatpush1.msra.mxu0 0.0
  %55 = vmatprep.subr.mxu0 0.0
  %56 = vmatpush1.msra.mxu0 0.0
  %57 = vmatprep.subr.mxu0 0.0
  %58 = vmatpush1.msra.mxu0 0.0
  %59 = vmatprep.subr.mxu0 0.0
  %60 = vmatpush1.msra.mxu0 0.0
  %61 = vmatprep.subr.mxu0 0.0
  %62 = vmatpush1.msra.mxu0 0.0
  %63 = vmatprep.subr.mxu0 0.0
  %64 = vmatpush1.msra.mxu0 0.0
  %65 = vmatprep.subr.mxu0 0.0
  %66 = vmatpush1.msra.mxu0 0.0
  %67 = vmatprep.subr.mxu0 0.0
  %68 = vmatpush1.msra.mxu0 0.0
  %69 = vmatprep.subr.mxu0 0.0
  %70 = vmatpush1.msra.mxu0 0.0
  %71 = vmatprep.subr.mxu0 0.0
  %72 = vmatpush1.msra.mxu0 0.0
  %73 = vmatprep.subr.mxu0 0.0
  %74 = vmatpush1.msra.mxu0 0.0
  %75 = vmatprep.subr.mxu0 0.0
  %76 = vmatpush1.msra.mxu0 0.0
  %77 = vmatprep.subr.mxu0 0.0
  %78 = vmatpush1.msra.mxu0 0.0
  %79 = vmatprep.subr.mxu0 0.0
  %80 = vmatpush1.msra.mxu0 0.0
  %81 = vmatprep.subr.mxu0 0.0
  %82 = vmatpush1.msra.mxu0 0.0
  %83 = vmatprep.subr.mxu0 0.0
  %84 = vmatpush1.msra.mxu0 0.0
  %85 = vmatprep.subr.mxu0 0.0
  %86 = vmatpush1.msra.mxu0 0.0
  %87 = vmatprep.subr.mxu0 0.0
  %88 = vmatpush1.msra.mxu0 0.0
  %89 = vmatprep.subr.mxu0 0.0
  %90 = vmatpush1.msra.mxu0 0.0
  %91 = vmatprep.subr.mxu0 0.0
  %92 = vmatpush1.msra.mxu0 0.0
  %93 = vmatprep.subr.mxu0 0.0
  %94 = vmatpush1.msra.mxu0 0.0
  %95 = vmatprep.subr.mxu0 0.0
  %96 = vmatpush1.msra.mxu0 0.0
  %97 = vmatprep.subr.mxu0 0.0
  %98 = vmatpush1.msra.mxu0 0.0
  %99 = vmatprep.subr.mxu0 0.0
  %100 = vmatpush1.msra.mxu0 0.0
  %101 = vmatprep.mubr.f32.mxu0 0.0
  %102 = vmatmul.mubr.f32.gmra.mrb[0].mxu0 %v32
  %v103 = vpop.f32.mrb[0].mxu0
  %v104 = vadd.f32 %v28, %v103
  %v105 = vpop.f32.mrb[0].mxu0
  %106 = vmatprep.mubr.f32.mxu0 0.0
  %107 = vmatmul.mubr.f32.gmra.mrb[0].mxu0 %v35
  %v108 = vpop.f32.mrb[0].mxu0
  %v109 = vadd.f32 %v28, %v108
  %v110 = vpop.f32.mrb[0].mxu0
  %111 = vdwg.mxu0
  %v112 = vsel %vm30, %v104, -inf
  %113 = vmax.xlane.f32.xlu0 %v112
  %v114 = vpop.xlane.xlu0 %113
  %v115 = vsel %vm30, %v109, -inf
  %116 = vmax.xlane.f32.xlu0 %v115
  %v117 = vpop.xlane.xlu0 %116
  %v118 = vsub.f32 %v104, %v114
  %v119 = vsub.f32 %v109, %v117
  %v120 = vmul.f32 %v118, 1.442695
  %v121 = vpow.pop %v120
  %v122 = vmul.f32 %v119, 1.442695
  %v123 = vpow.pop %v122
  %v124 = vsel %vm30, %v121, 0.0
  %125 = vadd.xlane.f32.xlu0 %v124
  %v126 = vpop.xlane.xlu0 %125
  %v127 = vsel %vm30, %v123, 0.0
  %128 = vadd.xlane.f32.xlu0 %v127
  %v129 = vpop.xlane.xlu0 %128
  %v130 = vlaneseq
  %v131 = vand.u32 %v130, 127
  %v132 = vld [vmem:[%s1] sm:$0xff]
  %v133 = vld [vmem:[%s1 + $0x8] sm:$0xff]
  %134 = vset.pattern.permute.xlu0 0
  %135 = vperm.xlu0 %134, %v132
  %v136 = vpop.permute.xlu0 %135
  %137 = vset.pattern.permute.xlu0 0
  %138 = vperm.xlu0 %137, %v133
  %v139 = vpop.permute.xlu0 %138
  %vm140 = vcmp.eq.s32.totalorder %v131, %v136
  %vm141 = vcmp.eq.s32.totalorder %v131, %v139
  %v142 = vsel %vm140, %v121, 0.0
  %v143 = vsel %vm141, %v123, 0.0
  %v144 = vsel %vm30, %v142, 0.0
  %145 = vadd.xlane.f32.xlu0 %v144
  %v146 = vpop.xlane.xlu0 %145
  %v147 = vsel %vm30, %v143, 0.0
  %148 = vadd.xlane.f32.xlu0 %v147
  %v149 = vpop.xlane.xlu0 %148
  %v150 = vrcp.pop %v126
  %v151 = vrcp.pop %v129
  %v152 = vmul.f32 %v146, %v150
  %v153 = vmul.f32 %v149, %v151
  %vm154 = vcmask 7168
  %155 = vst.msk [vmem:[%s4] sm:$0xff] %vm154, %v152
  %156 = vst.msk [vmem:[%s4 + $0x8] sm:$0xff] %vm154, %v153
  // Predicated region
  $region18: #{discriminant.1} parent=0 // pred_check
    _
  $region19: #{discriminant.1} parent=0 // pred_check_branch
    %158 = sbr.rel (0) target = $region21
  $region20: #{discriminant.1} parent=0 // pred_region
    _
  $region21: #{discriminant.1} parent=0 // pred_fallthru
    _
  // Predicated region
  $region22: #{discriminant.1} parent=0 // pred_check
    _
  $region23: #{discriminant.1} parent=0 // pred_check_branch
    %160 = sbr.rel (0) target = $region25
  $region24: #{discriminant.1} parent=0 // pred_region
    _
  $region25: #{discriminant.1} parent=0 // pred_fallthru
    _

</llo_original>
